<compile_context>
chip_gen: v7x
topology: tpu7x:2x2x1
jax: 0.10.0
libtpu: 0.0.40
codegen_flags: <defaults>
</compile_context>

<pallas_src>
import functools

import jax
import jax.numpy as jnp
from jax import lax
from jax.experimental import pallas as pl
from jax.experimental.pallas import tpu as pltpu

LANE = 128
_NEG_INF = -1e30  # large finite negative: avoids exp(-inf - (-inf)) = NaN


def _round_up(n, m):
    return ((n + m - 1) // m) * m


# -----------------------------------------------------------------------------
# Kernel 1: fused QKV projection (one wide matmul, scale folded into Q)
# -----------------------------------------------------------------------------
def _qkv_proj_kernel(x_ref, w_ref, q_ref, k_ref, v_ref, *, scale, d_out_p):
    # x_ref: (1, T, d_in_p)   w_ref: (d_in_p, 3*d_out_p)
    x = x_ref[0]
    qkv = jnp.dot(x, w_ref[...], preferred_element_type=jnp.float32)
    # fold 1/sqrt(d_out) into Q: S*d_out multiplies instead of S^2 score divides
    q_ref[0] = (qkv[:, :d_out_p] * scale).astype(q_ref.dtype)
    k_ref[0] = qkv[:, d_out_p:2 * d_out_p].astype(k_ref.dtype)
    v_ref[0] = qkv[:, 2 * d_out_p:].astype(v_ref.dtype)


# -----------------------------------------------------------------------------
# Kernel 2: causal flash attention over a lower-triangular (qi, ki) schedule
# -----------------------------------------------------------------------------
def _flash_attn_kernel(qi_ref, ki_ref, q_ref, k_ref, v_ref, o_ref,
                       m_sc, l_sc, acc_sc, *, block, approx_recip):
    t = pl.program_id(1)
    qi = qi_ref[t]
    ki = ki_ref[t]

    @pl.when(ki == 0)
    def _init():
        m_sc[...] = jnp.full_like(m_sc, _NEG_INF)
        l_sc[...] = jnp.zeros_like(l_sc)
        acc_sc[...] = jnp.zeros_like(acc_sc)

    q = q_ref[0]  # (T, D), already scaled by 1/sqrt(d_out)
    k = k_ref[0]  # (T, D)
    v = v_ref[0]  # (T, D)
    # contract last dims directly -> no XLU transpose of K
    s = lax.dot_general(q, k, (((1,), (1,)), ((), ())),
                        preferred_element_type=jnp.float32)  # (T, T)

    # Absolute-position causal mask.  Off-diagonal tiles (ki < qi) are fully
    # below the diagonal so the select is a no-op there; the diagonal tile gets
    # the real mask.  Padded KV columns (abs pos >= S) are strictly above the
    # diagonal for every real query row, hence also masked here.
    row = lax.broadcasted_iota(jnp.int32, s.shape, 0) + qi * block
    col = lax.broadcasted_iota(jnp.int32, s.shape, 1) + ki * block
    s = jnp.where(col > row, _NEG_INF, s)

    # Online softmax (f32 math; portable to v5e which has no bf16 VPU/EUP).
    # TODO(synk): on v6e/v7x a bf16 exp (p = exp((s - m_new).bf16)) relieves the
    # EUP/VPU slots; left in f32 here for cross-generation numerics.
    m_prev = m_sc[...]
    m_new = jnp.maximum(m_prev, jnp.max(s, axis=-1, keepdims=True))
    alpha = jnp.exp(m_prev - m_new)
    p = jnp.exp(s - m_new)
    l_sc[...] = alpha * l_sc[...] + jnp.sum(p, axis=-1, keepdims=True)
    acc_sc[...] = alpha * acc_sc[...] + jnp.dot(
        p.astype(v.dtype), v, preferred_element_type=jnp.float32)
    m_sc[...] = m_new

    # The diagonal tile is always the last KV tile for this q tile.
    @pl.when(ki == qi)
    def _finalize():
        inv = pl.reciprocal(l_sc[...], approx=approx_recip)
        o_ref[0] = (acc_sc[...] * inv).astype(o_ref.dtype)


# -----------------------------------------------------------------------------
# Wrapper
# -----------------------------------------------------------------------------
def causal_attention(x, w_query, w_key, w_value, *, block=None,
                     compute_dtype=jnp.bfloat16):
    """x: (B, S, d_in); weights: (d_in, d_out). Returns (B, S, d_out) in x.dtype.

    Dropout in the reference module has p=0.0 -> identity (not applied).
    """
    B, S, d_in = x.shape
    d_out = w_query.shape[1]

    d_in_p = _round_up(d_in, LANE)
    d_out_p = _round_up(d_out, LANE)
    if block is None:
        # 512 is a multiple of 256 (full-height MXU passes on v6e/v7x) and keeps
        # per-step VMEM at a few MiB -> safe on v7x's 64 MiB core as well.
        block = min(512, _round_up(S, LANE))
    S_p = _round_up(S, block)
    n_tiles = S_p // block

    scale = 1.0 / float(d_out) ** 0.5  # matches keys.shape[-1] ** 0.5
    approx_recip = jnp.dtype(compute_dtype) != jnp.dtype(jnp.float32)

    # Zero-pad to lane-dense shapes. Padded KV rows are masked by causality,
    # padded query rows / output columns are sliced off below.
    xp = jnp.pad(x.astype(compute_dtype),
                 ((0, 0), (0, S_p - S), (0, d_in_p - d_in)))

    def _pad_w(w):
        return jnp.pad(w.astype(compute_dtype),
                       ((0, d_in_p - d_in), (0, d_out_p - d_out)))

    w_cat = jnp.concatenate(
        [_pad_w(w_query), _pad_w(w_key), _pad_w(w_value)], axis=1)  # (d_in_p, 3*d_out_p)

    # --- fused QKV projection ------------------------------------------------
    q, k, v = pl.pallas_call(
        functools.partial(_qkv_proj_kernel, scale=scale, d_out_p=d_out_p),
        out_shape=(
            jax.ShapeDtypeStruct((B, S_p, d_out_p), compute_dtype),
            jax.ShapeDtypeStruct((B, S_p, d_out_p), compute_dtype),
            jax.ShapeDtypeStruct((B, S_p, d_out_p), compute_dtype),
        ),
        grid_spec=pltpu.PrefetchScalarGridSpec(
            num_scalar_prefetch=0,
            grid=(B, n_tiles),
            in_specs=[
                pl.BlockSpec((1, block, d_in_p), lambda b, i: (b, i, 0)),
                pl.BlockSpec((d_in_p, 3 * d_out_p), lambda b, i: (0, 0)),
            ],
            out_specs=[
                pl.BlockSpec((1, block, d_out_p), lambda b, i: (b, i, 0)),
                pl.BlockSpec((1, block, d_out_p), lambda b, i: (b, i, 0)),
                pl.BlockSpec((1, block, d_out_p), lambda b, i: (b, i, 0)),
            ],
        ),
        compiler_params=pltpu.CompilerParams(
            dimension_semantics=("parallel", "parallel"),
            vmem_limit_bytes=32 * 1024 * 1024,
        ),
    )(xp, w_cat)

    # --- causal flash attention: lower-triangular schedule --------------------
    # Enumerate only the n_tiles*(n_tiles+1)/2 causal (qi, ki) pairs.  Within
    # each qi, ki runs 0..qi, so ki==0 initializes the accumulators and ki==qi
    # (the diagonal, last tile for that query block) finalizes the output.
    qi_list, ki_list = [], []
    for qi in range(n_tiles):
        for ki in range(qi + 1):
            qi_list.append(qi)
            ki_list.append(ki)
    qi_sched = jnp.asarray(qi_list, dtype=jnp.int32)
    ki_sched = jnp.asarray(ki_list, dtype=jnp.int32)
    n_steps = len(qi_list)

    q_idx = lambda b, t, qs, ks: (b, qs[t], 0)
    kv_idx = lambda b, t, qs, ks: (b, ks[t], 0)

    out_p = pl.pallas_call(
        functools.partial(_flash_attn_kernel, block=block,
                          approx_recip=approx_recip),
        out_shape=jax.ShapeDtypeStruct((B, S_p, d_out_p), compute_dtype),
        grid_spec=pltpu.PrefetchScalarGridSpec(
            num_scalar_prefetch=2,
            grid=(B, n_steps),
            in_specs=[
                pl.BlockSpec((1, block, d_out_p), q_idx),
                pl.BlockSpec((1, block, d_out_p), kv_idx),
                pl.BlockSpec((1, block, d_out_p), kv_idx),
            ],
            out_specs=pl.BlockSpec((1, block, d_out_p), q_idx),
            scratch_shapes=[
                pltpu.VMEM((block, 1), jnp.float32),        # running max  m
                pltpu.VMEM((block, 1), jnp.float32),        # running sum  l
                pltpu.VMEM((block, d_out_p), jnp.float32),  # running numerator
            ],
        ),
        compiler_params=pltpu.CompilerParams(
            dimension_semantics=("parallel", "arbitrary"),
            vmem_limit_bytes=32 * 1024 * 1024,
        ),
    )(qi_sched, ki_sched, q, k, v)

    return out_p[:, :S, :d_out].astype(x.dtype)


# -----------------------------------------------------------------------------
# Pure-JAX reference (mirrors the PyTorch module)
# -----------------------------------------------------------------------------
def _reference(x, wq, wk, wv):
    q = x @ wq
    k = x @ wk
    v = x @ wv
    scores = jnp.einsum("bqd,bkd->bqk", q, k)
    S = x.shape[1]
    mask = jnp.triu(jnp.ones((S, S), dtype=bool), k=1)
    scores = jnp.where(mask[None], -jnp.inf, scores)
    attn = jax.nn.softmax(scores / (wq.shape[1] ** 0.5), axis=-1)
    return jnp.einsum("bqk,bkd->bqd", attn, v)


if __name__ == "__main__":
    # --- tiny case: exactly the PyTorch snippet shapes (B=2, S=6, d_in=3, d_out=2)
    d_in, d_out = 3, 2
    inputs = jnp.array(
        [[0.43, 0.15, 0.89],
         [0.55, 0.87, 0.66],
         [0.57, 0.85, 0.64],
         [0.22, 0.58, 0.33],
         [0.77, 0.25, 0.10],
         [0.05, 0.80, 0.55]],
        dtype=jnp.float32,
    )
    batch = jnp.stack([inputs, inputs], axis=0)  # (2, 6, 3)

    # deterministic weights, mimicking nn.Linear's U(-1/sqrt(d_in), 1/sqrt(d_in))
    key = jax.random.PRNGKey(0)
    kq, kk, kv, kx, kq2, kk2, kv2 = jax.random.split(key, 7)
    bound = 1.0 / (d_in ** 0.5)
    w_query = jax.random.uniform(kq, (d_in, d_out), jnp.float32, -bound, bound)
    w_key = jax.random.uniform(kk, (d_in, d_out), jnp.float32, -bound, bound)
    w_value = jax.random.uniform(kv, (d_in, d_out), jnp.float32, -bound, bound)

    ref = _reference(batch, w_query, w_key, w_value)

    # strict check: f32 operands reproduce the module numerics tightly
    out_f32 = jax.block_until_ready(
        causal_attention(batch, w_query, w_key, w_value,
                         compute_dtype=jnp.float32))
    assert out_f32.shape == (2, 6, d_out)
    assert jnp.allclose(out_f32, ref, atol=1e-5, rtol=1e-5)

    # default fast path: bf16 matmul operands, f32 accumulation / softmax,
    # bf16 output + approx reciprocal
    out_bf16 = jax.block_until_ready(
        causal_attention(batch, w_query, w_key, w_value,
                         compute_dtype=jnp.bfloat16))
    assert out_bf16.shape == (2, 6, d_out)
    assert jnp.allclose(out_bf16, ref, atol=3e-2, rtol=3e-2)

    # --- multi-tile case: exercises the lower-triangular schedule (n_tiles=3)
    B2, S2, d_in2, d_out2 = 2, 384, 8, 16
    x2 = jax.random.normal(kx, (B2, S2, d_in2), jnp.float32)
    b2 = 1.0 / (d_in2 ** 0.5)
    wq2 = jax.random.uniform(kq2, (d_in2, d_out2), jnp.float32, -b2, b2)
    wk2 = jax.random.uniform(kk2, (d_in2, d_out2), jnp.float32, -b2, b2)
    wv2 = jax.random.uniform(kv2, (d_in2, d_out2), jnp.float32, -b2, b2)
    ref2 = _reference(x2, wq2, wk2, wv2)

    out2_f32 = jax.block_until_ready(
        causal_attention(x2, wq2, wk2, wv2, block=128,
                         compute_dtype=jnp.float32))
    assert out2_f32.shape == (B2, S2, d_out2)
    assert jnp.allclose(out2_f32, ref2, atol=1e-3, rtol=1e-3)

    out2_bf16 = jax.block_until_ready(
        causal_attention(x2, wq2, wk2, wv2, block=128,
                         compute_dtype=jnp.bfloat16))
    assert out2_bf16.shape == (B2, S2, d_out2)
    assert jnp.allclose(out2_bf16, ref2, atol=3e-2, rtol=3e-2)

    print("KERNEL_OK")
</pallas_src>

<mosaic_0001>
module attributes {stable_mosaic.version = 11 : i64} {
  func.func @_qkv_proj_kernel(%arg0: i32, %arg1: i32, %arg2: memref<1x128x128xf32, #tpu.memory_space<vmem>>, %arg3: memref<128x384xf32, #tpu.memory_space<vmem>>, %arg4: memref<1x128x128xf32, #tpu.memory_space<vmem>>, %arg5: memref<1x128x128xf32, #tpu.memory_space<vmem>>, %arg6: memref<1x128x128xf32, #tpu.memory_space<vmem>>) attributes {dimension_semantics = [#tpu.dimension_semantics<parallel>, #tpu.dimension_semantics<parallel>], iteration_bounds = array<i64: 2, 1>, scalar_prefetch = 0 : i64, scratch_operands = 0 : i64, tpu.core_type = #tpu.core_type<tc>, window_params = [{transform_indices = @transform_0, window_bounds = array<i64: 1, 128, 128>}, {pipeline_mode = #tpu.pipeline_mode<synchronous>, transform_indices = @transform_1, window_bounds = array<i64: 128, 384>}, {transform_indices = @transform_2, window_bounds = array<i64: 1, 128, 128>}, {transform_indices = @transform_3, window_bounds = array<i64: 1, 128, 128>}, {transform_indices = @transform_4, window_bounds = array<i64: 1, 128, 128>}]} {
    %c0 = arith.constant 0 : index
    %c0_0 = arith.constant 0 : index
    %c0_1 = arith.constant 0 : index
    %0 = vector.load %arg2[%c0, %c0_0, %c0_1] : memref<1x128x128xf32, #tpu.memory_space<vmem>>, vector<1x128x128xf32>
    %1 = vector.shape_cast %0 : vector<1x128x128xf32> to vector<128x128xf32>
    %c0_2 = arith.constant 0 : index
    %c0_3 = arith.constant 0 : index
    %2 = vector.load %arg3[%c0_2, %c0_3] : memref<128x384xf32, #tpu.memory_space<vmem>>, vector<128x384xf32>
    %cst = arith.constant dense<0.000000e+00> : vector<128x384xf32>
    %3 = tpu.matmul %1, %2, %cst {dimension_numbers = #tpu.dot_dimension_numbers<[1], [0], [0], [1], [0, 0, 1, 1], [], []>} : vector<128x128xf32>, vector<128x384xf32>, vector<128x384xf32> -> vector<128x384xf32>
    %4 = vector.extract_strided_slice %3 {offsets = [0, 0], sizes = [128, 128], strides = [1, 1]} : vector<128x384xf32> to vector<128x128xf32>
    %cst_4 = arith.constant 0.707106769 : f32
    %5 = vector.broadcast %cst_4 : f32 to vector<128x128xf32>
    %6 = arith.mulf %4, %5 : vector<128x128xf32>
    %c0_5 = arith.constant 0 : index
    %c0_6 = arith.constant 0 : index
    %c0_7 = arith.constant 0 : index
    %7 = vector.load %arg4[%c0_5, %c0_6, %c0_7] : memref<1x128x128xf32, #tpu.memory_space<vmem>>, vector<1x128x128xf32>
    %8 = vector.shape_cast %7 : vector<1x128x128xf32> to vector<128x128xf32>
    %9 = vector.shape_cast %6 : vector<128x128xf32> to vector<1x128x128xf32>
    tpu.vector_store %arg4[%c0_5, %c0_6, %c0_7], %9 {strides = array<i32>} : memref<1x128x128xf32, #tpu.memory_space<vmem>>, vector<1x128x128xf32>,
    %10 = vector.extract_strided_slice %3 {offsets = [0, 128], sizes = [128, 128], strides = [1, 1]} : vector<128x384xf32> to vector<128x128xf32>
    %c0_8 = arith.constant 0 : index
    %c0_9 = arith.constant 0 : index
    %c0_10 = arith.constant 0 : index
    %11 = vector.load %arg5[%c0_8, %c0_9, %c0_10] : memref<1x128x128xf32, #tpu.memory_space<vmem>>, vector<1x128x128xf32>
    %12 = vector.shape_cast %11 : vector<1x128x128xf32> to vector<128x128xf32>
    %13 = vector.shape_cast %10 : vector<128x128xf32> to vector<1x128x128xf32>
    tpu.vector_store %arg5[%c0_8, %c0_9, %c0_10], %13 {strides = array<i32>} : memref<1x128x128xf32, #tpu.memory_space<vmem>>, vector<1x128x128xf32>,
    %14 = vector.extract_strided_slice %3 {offsets = [0, 256], sizes = [128, 128], strides = [1, 1]} : vector<128x384xf32> to vector<128x128xf32>
    %c0_11 = arith.constant 0 : index
    %c0_12 = arith.constant 0 : index
    %c0_13 = arith.constant 0 : index
    %15 = vector.load %arg6[%c0_11, %c0_12, %c0_13] : memref<1x128x128xf32, #tpu.memory_space<vmem>>, vector<1x128x128xf32>
    %16 = vector.shape_cast %15 : vector<1x128x128xf32> to vector<128x128xf32>
    %17 = vector.shape_cast %14 : vector<128x128xf32> to vector<1x128x128xf32>
    tpu.vector_store %arg6[%c0_11, %c0_12, %c0_13], %17 {strides = array<i32>} : memref<1x128x128xf32, #tpu.memory_space<vmem>>, vector<1x128x128xf32>,
    return
  }
  func.func @transform_0(%arg0: i32, %arg1: i32) -> (i32, i32, i32) {
    %c0_i32 = arith.constant 0 : i32
    %c0_i32_0 = arith.constant 0 : i32
    return %arg0, %arg1, %c0_i32 : i32, i32, i32
  }
  func.func @transform_1(%arg0: i32, %arg1: i32) -> (i32, i32) {
    %c0_i32 = arith.constant 0 : i32
    %c0_i32_0 = arith.constant 0 : i32
    %c0_i32_1 = arith.constant 0 : i32
    return %c0_i32, %c0_i32_0 : i32, i32
  }
  func.func @transform_2(%arg0: i32, %arg1: i32) -> (i32, i32, i32) {
    %c0_i32 = arith.constant 0 : i32
    %c0_i32_0 = arith.constant 0 : i32
    return %arg0, %arg1, %c0_i32 : i32, i32, i32
  }
  func.func @transform_3(%arg0: i32, %arg1: i32) -> (i32, i32, i32) {
    %c0_i32 = arith.constant 0 : i32
    %c0_i32_0 = arith.constant 0 : i32
    return %arg0, %arg1, %c0_i32 : i32, i32, i32
  }
  func.func @transform_4(%arg0: i32, %arg1: i32) -> (i32, i32, i32) {
    %c0_i32 = arith.constant 0 : i32
    %c0_i32_0 = arith.constant 0 : i32
    return %arg0, %arg1, %c0_i32 : i32, i32, i32
  }
}

</mosaic_0001>

<llo_original>
// kernel: tpu_custom_call.1
$region0: #{tpu_custom_call.1}
  #allocation0 [shape = 'u32[]', space=smem, size = 0x4, offset = 0x4, fixed_abs, tag = 'smem constant byte address 0x4 - core index']
  #allocation1 [shape = 'u32[144,128]{1,0:T(1,128)}', space=vmem, size = 0x12000, scoped, tag = 'internal scratch']
  %s0 = inlined_call_operand.hbm [shape: f32[2,128,128], index: 0, kind: input, shape index: {}]
  %s1 = inlined_call_operand.hbm [shape: f32[128,384], index: 1, kind: input, shape index: {}]
  %s2 = inlined_call_operand.hbm [shape: f32[2,128,128], index: 2, kind: output, shape index: {0}]
  %s3 = inlined_call_operand.hbm [shape: f32[2,128,128], index: 3, kind: output, shape index: {1}]
  %s4 = inlined_call_operand.hbm [shape: f32[2,128,128], index: 4, kind: output, shape index: {2}]
  %5 = xla_tuple %s2, %s3, %s4
  %s6 = sld [smem:[#allocation0]]
  $region65: #{tpu_custom_call.1} parent=0
    _
  %s8 = ssub.s32 1, %s6
  %s9 = scalar_select 0, %s8, %s6
  $region1: #{tpu_custom_call.1} parent=0
    #allocation2 [shape = 'u8[131072]{0}', space=vmem, size = 0x20000, scoped, tag = 'input window, operand 0']
    #allocation3 [shape = 's32[2]{0}', space=sflag, size = 0x8, scoped, tag = 'scoped memory for tpu_custom_call.1']
    #allocation4 [shape = 's32[2]{0}', space=sflag, size = 0x8, scoped, tag = 'scoped memory for tpu_custom_call.1']
    #allocation5 [shape = 'u8[196608]{0}', space=vmem, size = 0x30000, scoped, tag = 'input window, operand 1, single buffered']
    #allocation6 [shape = 's32[1]{0}', space=sflag, size = 0x4, scoped, tag = 'scoped memory for tpu_custom_call.1']
    #allocation7 [shape = 'u8[131072]{0}', space=vmem, size = 0x20000, scoped, tag = 'output window, operand 0']
    #allocation8 [shape = 'u8[131072]{0}', space=vmem, size = 0x20000, scoped, tag = 'output window, operand 1']
    #allocation9 [shape = 's32[2]{0}', space=sflag, size = 0x8, scoped, tag = 'scoped memory for tpu_custom_call.1']
    #allocation10 [shape = 'u8[131072]{0}', space=vmem, size = 0x20000, scoped, tag = 'output window, operand 2']
    %10 = vsyncpa [#allocation3], 0
    %s11 = scalar_lea.sflag [#allocation3], 1
    %12 = vsyncpa %s11, 0
    %13 = vsyncpa [#allocation6], 0
    %14 = vsyncpa [#allocation4], 0
    %s15 = scalar_lea.sflag [#allocation4], 1
    %16 = vsyncpa %s15, 0
    %17 = vsyncpa [#allocation9], 0
    %s18 = scalar_lea.sflag [#allocation9], 1
    %19 = vsyncpa %s18, 0
    loop: start=0, step=1, limit=4
    $region2: #{tpu_custom_call.1} parent=1 // loop_pre_header
      _
    $region3: #{tpu_custom_call.1} parent=1 // loop_header
      %s21 = sphi 0, %s25
      %p22 = scmp.ge.s32.totalorder %s21, 4
      %s28 = sphi 0, %s40
      %s29 = sphi 0, %s36
      %s30 = sphi 0, %s28
      %s31 = sphi 0, %s29
      %s32 = sphi 0, %s30
      %s33 = sphi 0, %s31
      %s45 = sphi 0, %s47
      %s48 = sphi 0, %s45
      %s49 = sphi 0, %s48
      %s65 = sphi 0, %s49
      %s69 = sphi 0, %s69
      %s71 = sphi 0, %s69
      %s72 = sphi 0, %s71
      %s86 = sphi 0, %s72
      %s94 = sphi 0, %s96
      %s97 = sphi 0, %s94
      %s98 = sphi 0, %s97
      %s114 = sphi 0, %s98
      %s122 = sphi 0, %s124
      %s125 = sphi 0, %s122
      %s126 = sphi 0, %s125
      %s142 = sphi 0, %s126
      %s150 = sphi 0, %s152
      %s153 = sphi 0, %s150
      %s154 = sphi 0, %s153
      %s170 = sphi 0, %s154
    $region4: #{tpu_custom_call.1} parent=1 // loop_header_branch
      %24 = sbr.rel (%p22) target = $region8
    $region5: #{tpu_custom_call.1} parent=1 // loop_body
      %s26 = ssub.s32 %s21, 1
      %s27 = ssub.s32 %s21, 2
      %s34 = sadd.s32 1, %s29
      %p35 = scmp.ge.s32.totalorder %s34, 1
      %s36 = scalar_select %p35, 0, %s34
      %s37 = sadd.s32 1, %s28
      %s38 = scalar_select %p35, %s37, %s28
      %p39 = scmp.ge.s32.totalorder %s38, 2
      %s40 = scalar_select %p39, 0, %s38
      %s41 = ssub.s32 %s28, %s40
      %s42 = ssub.s32 %s29, %s36
      %s43 = sor.u32 %s41, %s42
      %p44 = scmp.eq.s32.totalorder %s43, 0
      %s46 = sadd.s32 %s45, 1
      %s47 = scalar_select %p44, %s45, %s46
      %p50 = pneg %p44
      %p51 = scmp.eq.s32.totalorder %s21, 1
      %p52 = por %p50, %p51
      %p53 = scmp.ne.s32.totalorder %s45, %s48
      %p54 = scmp.eq.s32.totalorder %s21, 0
      %p55 = por %p53, %p54
      %p56 = scmp.ne.s32.totalorder %s45, %s48
      %p57 = scmp.eq.s32.totalorder %s26, 1
      %p58 = por %p56, %p57
      %p59 = scmp.ne.s32.totalorder %s48, %s49
      %p60 = scmp.eq.s32.totalorder %s26, 0
      %p61 = por %p59, %p60
      %p62 = scmp.ne.s32.totalorder %s48, %s49
      %p63 = scmp.eq.s32.totalorder %s27, 1
      %p64 = por %p62, %p63
      %p66 = scmp.ne.s32.totalorder %s49, %s65
      %p67 = scmp.eq.s32.totalorder %s27, 0
      %p68 = por %p66, %p67
      %s70 = sadd.s32 %s69, 1
      %p73 = scmp.eq.s32.totalorder %s21, 1
      %p74 = scmp.ne.s32.totalorder %s69, %s71
      %p75 = scmp.eq.s32.totalorder %s21, 0
      %p76 = por %p74, %p75
      %p77 = scmp.ne.s32.totalorder %s69, %s71
      %p78 = scmp.eq.s32.totalorder %s26, 1
      %p79 = por %p77, %p78
      %p80 = scmp.ne.s32.totalorder %s71, %s72
      %p81 = scmp.eq.s32.totalorder %s26, 0
      %p82 = por %p80, %p81
      %p83 = scmp.ne.s32.totalorder %s71, %s72
      %p84 = scmp.eq.s32.totalorder %s27, 1
      %p85 = por %p83, %p84
      %p87 = scmp.ne.s32.totalorder %s72, %s86
      %p88 = scmp.eq.s32.totalorder %s27, 0
      %p89 = por %p87, %p88
      %s90 = ssub.s32 %s28, %s40
      %s91 = ssub.s32 %s29, %s36
      %s92 = sor.u32 %s90, %s91
      %p93 = scmp.eq.s32.totalorder %s92, 0
      %s95 = sadd.s32 %s94, 1
      %s96 = scalar_select %p93, %s94, %s95
      %p99 = pneg %p93
      %p100 = scmp.eq.s32.totalorder %s21, 1
      %p101 = por %p99, %p100
      %p102 = scmp.ne.s32.totalorder %s94, %s97
      %p103 = scmp.eq.s32.totalorder %s21, 0
      %p104 = por %p102, %p103
      %p105 = scmp.ne.s32.totalorder %s94, %s97
      %p106 = scmp.eq.s32.totalorder %s26, 1
      %p107 = por %p105, %p106
      %p108 = scmp.ne.s32.totalorder %s97, %s98
      %p109 = scmp.eq.s32.totalorder %s26, 0
      %p110 = por %p108, %p109
      %p111 = scmp.ne.s32.totalorder %s97, %s98
      %p112 = scmp.eq.s32.totalorder %s27, 1
      %p113 = por %p111, %p112
      %p115 = scmp.ne.s32.totalorder %s98, %s114
      %p116 = scmp.eq.s32.totalorder %s27, 0
      %p117 = por %p115, %p116
      %s118 = ssub.s32 %s28, %s40
      %s119 = ssub.s32 %s29, %s36
      %s120 = sor.u32 %s118, %s119
      %p121 = scmp.eq.s32.totalorder %s120, 0
      %s123 = sadd.s32 %s122, 1
      %s124 = scalar_select %p121, %s122, %s123
      %p127 = pneg %p121
      %p128 = scmp.eq.s32.totalorder %s21, 1
      %p129 = por %p127, %p128
      %p130 = scmp.ne.s32.totalorder %s122, %s125
      %p131 = scmp.eq.s32.totalorder %s21, 0
      %p132 = por %p130, %p131
      %p133 = scmp.ne.s32.totalorder %s122, %s125
      %p134 = scmp.eq.s32.totalorder %s26, 1
      %p135 = por %p133, %p134
      %p136 = scmp.ne.s32.totalorder %s125, %s126
      %p137 = scmp.eq.s32.totalorder %s26, 0
      %p138 = por %p136, %p137
      %p139 = scmp.ne.s32.totalorder %s125, %s126
      %p140 = scmp.eq.s32.totalorder %s27, 1
      %p141 = por %p139, %p140
      %p143 = scmp.ne.s32.totalorder %s126, %s142
      %p144 = scmp.eq.s32.totalorder %s27, 0
      %p145 = por %p143, %p144
      %s146 = ssub.s32 %s28, %s40
      %s147 = ssub.s32 %s29, %s36
      %s148 = sor.u32 %s146, %s147
      %p149 = scmp.eq.s32.totalorder %s148, 0
      %s151 = sadd.s32 %s150, 1
      %s152 = scalar_select %p149, %s150, %s151
      %p155 = pneg %p149
      %p156 = scmp.eq.s32.totalorder %s21, 1
      %p157 = por %p155, %p156
      %p158 = scmp.ne.s32.totalorder %s150, %s153
      %p159 = scmp.eq.s32.totalorder %s21, 0
      %p160 = por %p158, %p159
      %p161 = scmp.ne.s32.totalorder %s150, %s153
      %p162 = scmp.eq.s32.totalorder %s26, 1
      %p163 = por %p161, %p162
      %p164 = scmp.ne.s32.totalorder %s153, %s154
      %p165 = scmp.eq.s32.totalorder %s26, 0
      %p166 = por %p164, %p165
      %p167 = scmp.ne.s32.totalorder %s153, %s154
      %p168 = scmp.eq.s32.totalorder %s27, 1
      %p169 = por %p167, %p168
      %p171 = scmp.ne.s32.totalorder %s154, %s170
      %p172 = scmp.eq.s32.totalorder %s27, 0
      %p173 = por %p171, %p172
      %p174 = scmp.le.s32.totalorder 1, %s21
      %p175 = scmp.lt.s32.totalorder %s21, 3
      %p176 = pnand %p174, %p175
      %p177 = pneg %p176
      // Predicated region
      $region9: #{tpu_custom_call.1} parent=5 // pred_check
        _
      $region10: #{tpu_custom_call.1} parent=5 // pred_check_branch
        %179 = sbr.rel (%p176) target = $region12
      $region11: #{tpu_custom_call.1} parent=5 // pred_region
        %s180 = ssub.s32 %s21, 1
        // Predicated region
        $region13: #{tpu_custom_call.1} parent=11 // pred_check
          %p181 = pneg %p82
        $region14: #{tpu_custom_call.1} parent=11 // pred_check_branch
          %183 = sbr.rel (%p181) target = $region16
        $region15: #{tpu_custom_call.1} parent=11 // pred_region
          %s185 = ssub.s32 6144, 6144
          %186 = vsyncadd [#allocation6], %s185
          %s187 = sshll.u32 [#allocation5], 4
          %s188 = int_to_ptr.vmem [resolvable:$true] %s187
          %193 = dma.hbm_to_vmem [thread:$0]  %s1, 6144, %s188, [#allocation6], 384, 384, 24
        $region16: #{tpu_custom_call.1} parent=11 // pred_fallthru
          _
      $region12: #{tpu_custom_call.1} parent=5 // pred_fallthru
        _
      %p194 = scmp.lt.s32.totalorder %s21, 2
      // Predicated region
      $region17: #{tpu_custom_call.1} parent=5 // pred_check
        %p195 = pneg %p194
      $region18: #{tpu_custom_call.1} parent=5 // pred_check_branch
        %197 = sbr.rel (%p195) target = $region20
      $region19: #{tpu_custom_call.1} parent=5 // pred_region
        // Predicated region
        $region21: #{tpu_custom_call.1} parent=19 // pred_check
          %p198 = pneg %p55
        $region22: #{tpu_custom_call.1} parent=19 // pred_check_branch
          %200 = sbr.rel (%p198) target = $region24
        $region23: #{tpu_custom_call.1} parent=19 // pred_region
          %s201 = sand.u32 %s45, 1
          %s202 = scalar_lea.sflag [#allocation3], %s201
          %s203 = sand.u32 %s45, 1
          %s204 = smul.addr %s203, 128
          %s205 = scalar_lea.vmem [#allocation2], %s204
          %s206 = smul.u32 16, %s29
          %s208 = ssub.s32 2048, 2048
          %209 = vsyncadd %s202, %s208
          %s210 = smul.addr %s28, 16
          %s211 = sadd.s32 %s206, %s210
          %s212 = smul.addr %s211, 128
          %s213 = scalar_lea.hbm %s0, %s212
          %s214 = sshll.u32 %s205, 4
          %s215 = int_to_ptr.vmem [resolvable:$true] %s214
          %220 = dma.hbm_to_vmem [thread:$0]  %s213, 2048, %s215, %s202, 128, 128, 8
        $region24: #{tpu_custom_call.1} parent=19 // pred_fallthru
          _
      $region20: #{tpu_custom_call.1} parent=5 // pred_fallthru
        _
      %p221 = scmp.le.s32.totalorder 1, %s21
      %p222 = scmp.lt.s32.totalorder %s21, 3
      %p223 = pnand %p221, %p222
      %p224 = pneg %p223
      // Predicated region
      $region25: #{tpu_custom_call.1} parent=5 // pred_check
        _
      $region26: #{tpu_custom_call.1} parent=5 // pred_check_branch
        %226 = sbr.rel (%p223) target = $region28
      $region27: #{tpu_custom_call.1} parent=5 // pred_region
        %s227 = ssub.s32 %s21, 1
        %s228 = sand.u32 %s48, 1
        %s229 = scalar_lea.sflag [#allocation3], %s228
        %s230 = sand.u32 %s48, 1
        %s231 = smul.addr %s230, 128
        %s232 = scalar_lea.vmem [#allocation2], %s231
        // Predicated region
        $region29: #{tpu_custom_call.1} parent=27 // pred_check
          %p233 = pneg %p61
        $region30: #{tpu_custom_call.1} parent=27 // pred_check_branch
          %235 = sbr.rel (%p233) target = $region32
        $region31: #{tpu_custom_call.1} parent=27 // pred_region
          %236 = dma.done %s229, 2048
        $region32: #{tpu_custom_call.1} parent=27 // pred_fallthru
          _
        // Predicated region
        $region33: #{tpu_custom_call.1} parent=27 // pred_check
          %p237 = pneg %p82
        $region34: #{tpu_custom_call.1} parent=27 // pred_check_branch
          %239 = sbr.rel (%p237) target = $region36
        $region35: #{tpu_custom_call.1} parent=27 // pred_region
          %240 = dma.done [#allocation6], 6144
        $region36: #{tpu_custom_call.1} parent=27 // pred_fallthru
          _
        %s241 = sand.u32 %s48, 1
        %s242 = scalar_lea.sflag [#allocation3], %s241
        %s243 = sand.u32 %s48, 1
        %s244 = smul.addr %s243, 128
        %s245 = scalar_lea.vmem [#allocation2], %s244
        %p246 = pneg %p61
        %p247 = pneg %p58
        %p248 = pneg %p82
        %p249 = pneg %p79
        %p250 = pneg %p110
        %p251 = pneg %p107
        %s252 = sand.u32 %s97, 1
        %s253 = scalar_lea.sflag [#allocation4], %s252
        %s254 = sand.u32 %s97, 1
        %s255 = smul.addr %s254, 128
        %s256 = scalar_lea.vmem [#allocation7], %s255
        %p257 = pneg %p138
        %p258 = pneg %p135
        %s259 = sand.u32 %s26, 1
        %s260 = scalar_lea.sflag [#allocation9], %s259
        %s261 = sand.u32 %s125, 1
        %s262 = smul.addr %s261, 128
        %s263 = scalar_lea.vmem [#allocation8], %s262
        %p264 = pneg %p166
        %p265 = pneg %p163
        %s266 = sand.u32 %s26, 1
        %s267 = scalar_lea.sflag [#allocation9], %s266
        %s268 = sand.u32 %s153, 1
        %s269 = smul.addr %s268, 128
        %s270 = scalar_lea.vmem [#allocation10], %s269
        %s271 = smul.u32 16, %s31
        %s272 = smul.u32 16, %s31
        %s273 = smul.u32 16, %s31
        %s274 = smul.u32 16, %s31
        %v275 = vld [vmem:[%s232] sm:$0xff]
        %v276 = vld [vmem:[%s232 + $0x8] sm:$0xff]
        %v277 = vld [vmem:[%s232 + $0x10] sm:$0xff]
        %v278 = vld [vmem:[%s232 + $0x18] sm:$0xff]
        %v279 = vld [vmem:[%s232 + $0x20] sm:$0xff]
        %v280 = vld [vmem:[%s232 + $0x28] sm:$0xff]
        %v281 = vld [vmem:[%s232 + $0x30] sm:$0xff]
        %v282 = vld [vmem:[%s232 + $0x38] sm:$0xff]
        %v283 = vld [vmem:[%s232 + $0x40] sm:$0xff]
        %v284 = vld [vmem:[%s232 + $0x48] sm:$0xff]
        %v285 = vld [vmem:[%s232 + $0x50] sm:$0xff]
        %v286 = vld [vmem:[%s232 + $0x58] sm:$0xff]
        %v287 = vld [vmem:[%s232 + $0x60] sm:$0xff]
        %v288 = vld [vmem:[%s232 + $0x68] sm:$0xff]
        %v289 = vld [vmem:[%s232 + $0x70] sm:$0xff]
        %v290 = vld [vmem:[%s232 + $0x78] sm:$0xff]
        %v291 = vld [vmem:[#allocation5] sm:$0xff]
        %v292 = vld [vmem:[#allocation5 + $0x8] sm:$0xff]
        %v293 = vld [vmem:[#allocation5 + $0x10] sm:$0xff]
        %v294 = vld [vmem:[#allocation5 + $0x18] sm:$0xff]
        %v295 = vld [vmem:[#allocation5 + $0x20] sm:$0xff]
        %v296 = vld [vmem:[#allocation5 + $0x28] sm:$0xff]
        %v297 = vld [vmem:[#allocation5 + $0x30] sm:$0xff]
        %v298 = vld [vmem:[#allocation5 + $0x38] sm:$0xff]
        %v299 = vld [vmem:[#allocation5 + $0x40] sm:$0xff]
        %v300 = vld [vmem:[#allocation5 + $0x48] sm:$0xff]
        %v301 = vld [vmem:[#allocation5 + $0x50] sm:$0xff]
        %v302 = vld [vmem:[#allocation5 + $0x58] sm:$0xff]
        %v303 = vld [vmem:[#allocation5 + $0x60] sm:$0xff]
        %v304 = vld [vmem:[#allocation5 + $0x68] sm:$0xff]
        %v305 = vld [vmem:[#allocation5 + $0x70] sm:$0xff]
        %v306 = vld [vmem:[#allocation5 + $0x78] sm:$0xff]
        %v307 = vld [vmem:[#allocation5 + $0x80] sm:$0xff]
        %v308 = vld [vmem:[#allocation5 + $0x88] sm:$0xff]
        %v309 = vld [vmem:[#allocation5 + $0x90] sm:$0xff]
        %v310 = vld [vmem:[#allocation5 + $0x98] sm:$0xff]
        %v311 = vld [vmem:[#allocation5 + $0xa0] sm:$0xff]
        %v312 = vld [vmem:[#allocation5 + $0xa8] sm:$0xff]
        %v313 = vld [vmem:[#allocation5 + $0xb0] sm:$0xff]
        %v314 = vld [vmem:[#allocation5 + $0xb8] sm:$0xff]
        %v315 = vld [vmem:[#allocation5 + $0xc0] sm:$0xff]
        %v316 = vld [vmem:[#allocation5 + $0xc8] sm:$0xff]
        %v317 = vld [vmem:[#allocation5 + $0xd0] sm:$0xff]
        %v318 = vld [vmem:[#allocation5 + $0xd8] sm:$0xff]
        %v319 = vld [vmem:[#allocation5 + $0xe0] sm:$0xff]
        %v320 = vld [vmem:[#allocation5 + $0xe8] sm:$0xff]
        %v321 = vld [vmem:[#allocation5 + $0xf0] sm:$0xff]
        %v322 = vld [vmem:[#allocation5 + $0xf8] sm:$0xff]
        %v323 = vld [vmem:[#allocation5 + $0x100] sm:$0xff]
        %v324 = vld [vmem:[#allocation5 + $0x108] sm:$0xff]
        %v325 = vld [vmem:[#allocation5 + $0x110] sm:$0xff]
        %v326 = vld [vmem:[#allocation5 + $0x118] sm:$0xff]
        %v327 = vld [vmem:[#allocation5 + $0x120] sm:$0xff]
        %v328 = vld [vmem:[#allocation5 + $0x128] sm:$0xff]
        %v329 = vld [vmem:[#allocation5 + $0x130] sm:$0xff]
        %v330 = vld [vmem:[#allocation5 + $0x138] sm:$0xff]
        %v331 = vld [vmem:[#allocation5 + $0x140] sm:$0xff]
        %v332 = vld [vmem:[#allocation5 + $0x148] sm:$0xff]
        %v333 = vld [vmem:[#allocation5 + $0x150] sm:$0xff]
        %v334 = vld [vmem:[#allocation5 + $0x158] sm:$0xff]
        %v335 = vld [vmem:[#allocation5 + $0x160] sm:$0xff]
        %v336 = vld [vmem:[#allocation5 + $0x168] sm:$0xff]
        %v337 = vld [vmem:[#allocation5 + $0x170] sm:$0xff]
        %v338 = vld [vmem:[#allocation5 + $0x178] sm:$0xff]
        %339 = vmatprep.subr.mxu0 %v292
        %340 = vmatpush1.msra.mxu0 %v291
        %341 = vmatprep.subr.mxu0 %v295
        %342 = vmatpush1.msra.mxu0 %v294
        %343 = vmatprep.subr.mxu0 %v298
        %344 = vmatpush1.msra.mxu0 %v297
        %345 = vmatprep.subr.mxu0 %v301
        %346 = vmatpush1.msra.mxu0 %v300
        %347 = vmatprep.subr.mxu0 %v304
        %348 = vmatpush1.msra.mxu0 %v303
        %349 = vmatprep.subr.mxu0 %v307
        %350 = vmatpush1.msra.mxu0 %v306
        %351 = vmatprep.subr.mxu0 %v310
        %352 = vmatpush1.msra.mxu0 %v309
        %353 = vmatprep.subr.mxu0 %v313
        %354 = vmatpush1.msra.mxu0 %v312
        %355 = vmatprep.subr.mxu0 %v316
        %356 = vmatpush1.msra.mxu0 %v315
        %357 = vmatprep.subr.mxu0 %v319
        %358 = vmatpush1.msra.mxu0 %v318
        %359 = vmatprep.subr.mxu0 %v322
        %360 = vmatpush1.msra.mxu0 %v321
        %361 = vmatprep.subr.mxu0 %v325
        %362 = vmatpush1.msra.mxu0 %v324
        %363 = vmatprep.subr.mxu0 %v328
        %364 = vmatpush1.msra.mxu0 %v327
        %365 = vmatprep.subr.mxu0 %v331
        %366 = vmatpush1.msra.mxu0 %v330
        %367 = vmatprep.subr.mxu0 %v334
        %368 = vmatpush1.msra.mxu0 %v333
        %369 = vmatprep.subr.mxu0 %v337
        %370 = vmatpush1.msra.mxu0 %v336
        %371 = vmatprep.subr.mxu0 0.0
        %372 = vmatpush1.msra.mxu0 0.0
        %373 = vmatprep.subr.mxu0 0.0
        %374 = vmatpush1.msra.mxu0 0.0
        %375 = vmatprep.subr.mxu0 0.0
        %376 = vmatpush1.msra.mxu0 0.0
        %377 = vmatprep.subr.mxu0 0.0
        %378 = vmatpush1.msra.mxu0 0.0
        %379 = vmatprep.subr.mxu0 0.0
        %380 = vmatpush1.msra.mxu0 0.0
        %381 = vmatprep.subr.mxu0 0.0
        %382 = vmatpush1.msra.mxu0 0.0
        %383 = vmatprep.subr.mxu0 0.0
        %384 = vmatpush1.msra.mxu0 0.0
        %385 = vmatprep.subr.mxu0 0.0
        %386 = vmatpush1.msra.mxu0 0.0
        %387 = vmatprep.subr.mxu0 0.0
        %388 = vmatpush1.msra.mxu0 0.0
        %389 = vmatprep.subr.mxu0 0.0
        %390 = vmatpush1.msra.mxu0 0.0
        %391 = vmatprep.subr.mxu0 0.0
        %392 = vmatpush1.msra.mxu0 0.0
        %393 = vmatprep.subr.mxu0 0.0
        %394 = vmatpush1.msra.mxu0 0.0
        %395 = vmatprep.subr.mxu0 0.0
        %396 = vmatpush1.msra.mxu0 0.0
        %397 = vmatprep.subr.mxu0 0.0
        %398 = vmatpush1.msra.mxu0 0.0
        %399 = vmatprep.subr.mxu0 0.0
        %400 = vmatpush1.msra.mxu0 0.0
        %401 = vmatprep.subr.mxu0 0.0
        %402 = vmatpush1.msra.mxu0 0.0
        %403 = vmatprep.mubr.f32.mxu0 0.0
        %404 = vmatmul.mubr.f32.gmra.mrb[0].mxu0 %v275
        %v405 = vpop.f32.mrb[0].mxu0
        %v406 = vadd.f32 0.0, %v405
        %v407 = vpop.f32.mrb[0].mxu0
        %v408 = vadd.f32 0.0, %v407
        %409 = vmatprep.mubr.f32.mxu0 0.0
        %410 = vmatmul.mubr.f32.gmra.mrb[0].mxu0 %v276
        %v411 = vpop.f32.mrb[0].mxu0
        %v412 = vadd.f32 0.0, %v411
        %v413 = vpop.f32.mrb[0].mxu0
        %v414 = vadd.f32 0.0, %v413
        %415 = vmatprep.mubr.f32.mxu0 0.0
        %416 = vmatmul.mubr.f32.gmra.mrb[0].mxu0 %v277
        %v417 = vpop.f32.mrb[0].mxu0
        %v418 = vadd.f32 0.0, %v417
        %v419 = vpop.f32.mrb[0].mxu0
        %v420 = vadd.f32 0.0, %v419
        %421 = vmatprep.mubr.f32.mxu0 0.0
        %422 = vmatmul.mubr.f32.gmra.mrb[0].mxu0 %v278
        %v423 = vpop.f32.mrb[0].mxu0
        %v424 = vadd.f32 0.0, %v423
        %v425 = vpop.f32.mrb[0].mxu0
        %v426 = vadd.f32 0.0, %v425
        %427 = vmatprep.mubr.f32.mxu0 0.0
        %428 = vmatmul.mubr.f32.gmra.mrb[0].mxu0 %v279
        %v429 = vpop.f32.mrb[0].mxu0
        %v430 = vadd.f32 0.0, %v429
        %v431 = vpop.f32.mrb[0].mxu0
        %v432 = vadd.f32 0.0, %v431
        %433 = vmatprep.mubr.f32.mxu0 0.0
        %434 = vmatmul.mubr.f32.gmra.mrb[0].mxu0 %v280
        %v435 = vpop.f32.mrb[0].mxu0
        %v436 = vadd.f32 0.0, %v435
        %v437 = vpop.f32.mrb[0].mxu0
        %v438 = vadd.f32 0.0, %v437
        %439 = vmatprep.mubr.f32.mxu0 0.0
        %440 = vmatmul.mubr.f32.gmra.mrb[0].mxu0 %v281
        %v441 = vpop.f32.mrb[0].mxu0
        %v442 = vadd.f32 0.0, %v441
        %v443 = vpop.f32.mrb[0].mxu0
        %v444 = vadd.f32 0.0, %v443
        %445 = vmatprep.mubr.f32.mxu0 0.0
        %446 = vmatmul.mubr.f32.gmra.mrb[0].mxu0 %v282
        %v447 = vpop.f32.mrb[0].mxu0
        %v448 = vadd.f32 0.0, %v447
        %v449 = vpop.f32.mrb[0].mxu0
        %v450 = vadd.f32 0.0, %v449
        %451 = vmatprep.mubr.f32.mxu0 0.0
        %452 = vmatmul.mubr.f32.gmra.mrb[0].mxu0 %v283
        %v453 = vpop.f32.mrb[0].mxu0
        %v454 = vadd.f32 0.0, %v453
        %v455 = vpop.f32.mrb[0].mxu0
        %v456 = vadd.f32 0.0, %v455
        %457 = vmatprep.mubr.f32.mxu0 0.0
        %458 = vmatmul.mubr.f32.gmra.mrb[0].mxu0 %v284
        %v459 = vpop.f32.mrb[0].mxu0
        %v460 = vadd.f32 0.0, %v459
        %v461 = vpop.f32.mrb[0].mxu0
        %v462 = vadd.f32 0.0, %v461
        %463 = vmatprep.mubr.f32.mxu0 0.0
        %464 = vmatmul.mubr.f32.gmra.mrb[0].mxu0 %v285
        %v465 = vpop.f32.mrb[0].mxu0
        %v466 = vadd.f32 0.0, %v465
        %v467 = vpop.f32.mrb[0].mxu0
        %v468 = vadd.f32 0.0, %v467
        %469 = vmatprep.mubr.f32.mxu0 0.0
        %470 = vmatmul.mubr.f32.gmra.mrb[0].mxu0 %v286
        %v471 = vpop.f32.mrb[0].mxu0
        %v472 = vadd.f32 0.0, %v471
        %v473 = vpop.f32.mrb[0].mxu0
        %v474 = vadd.f32 0.0, %v473
        %475 = vmatprep.mubr.f32.mxu0 0.0
        %476 = vmatmul.mubr.f32.gmra.mrb[0].mxu0 %v287
        %v477 = vpop.f32.mrb[0].mxu0
        %v478 = vadd.f32 0.0, %v477
        %v479 = vpop.f32.mrb[0].mxu0
        %v480 = vadd.f32 0.0, %v479
        %481 = vmatprep.mubr.f32.mxu0 0.0
        %482 = vmatmul.mubr.f32.gmra.mrb[0].mxu0 %v288
        %v483 = vpop.f32.mrb[0].mxu0
        %v484 = vadd.f32 0.0, %v483
        %v485 = vpop.f32.mrb[0].mxu0
        %v486 = vadd.f32 0.0, %v485
        %487 = vmatprep.mubr.f32.mxu0 0.0
        %488 = vmatmul.mubr.f32.gmra.mrb[0].mxu0 %v289
        %v489 = vpop.f32.mrb[0].mxu0
        %v490 = vadd.f32 0.0, %v489
        %v491 = vpop.f32.mrb[0].mxu0
        %v492 = vadd.f32 0.0, %v491
        %493 = vmatprep.mubr.f32.mxu0 0.0
        %494 = vmatmul.mubr.f32.gmra.mrb[0].mxu0 %v290
        %v495 = vpop.f32.mrb[0].mxu0
        %v496 = vadd.f32 0.0, %v495
        %v497 = vpop.f32.mrb[0].mxu0
        %v498 = vadd.f32 0.0, %v497
        %499 = vdwg.mxu0
        %500 = vmatprep.subr.mxu0 0.0
        %501 = vmatpush1.msra.mxu0 %v293
        %502 = vmatprep.subr.mxu0 0.0
        %503 = vmatpush1.msra.mxu0 %v296
        %504 = vmatprep.subr.mxu0 0.0
        %505 = vmatpush1.msra.mxu0 %v299
        %506 = vmatprep.subr.mxu0 0.0
        %507 = vmatpush1.msra.mxu0 %v302
        %508 = vmatprep.subr.mxu0 0.0
        %509 = vmatpush1.msra.mxu0 %v305
        %510 = vmatprep.subr.mxu0 0.0
        %511 = vmatpush1.msra.mxu0 %v308
        %512 = vmatprep.subr.mxu0 0.0
        %513 = vmatpush1.msra.mxu0 %v311
        %514 = vmatprep.subr.mxu0 0.0
        %515 = vmatpush1.msra.mxu0 %v314
        %516 = vmatprep.subr.mxu0 0.0
        %517 = vmatpush1.msra.mxu0 %v317
        %518 = vmatprep.subr.mxu0 0.0
        %519 = vmatpush1.msra.mxu0 %v320
        %520 = vmatprep.subr.mxu0 0.0
        %521 = vmatpush1.msra.mxu0 %v323
        %522 = vmatprep.subr.mxu0 0.0
        %523 = vmatpush1.msra.mxu0 %v326
        %524 = vmatprep.subr.mxu0 0.0
        %525 = vmatpush1.msra.mxu0 %v329
        %526 = vmatprep.subr.mxu0 0.0
        %527 = vmatpush1.msra.mxu0 %v332
        %528 = vmatprep.subr.mxu0 0.0
        %529 = vmatpush1.msra.mxu0 %v335
        %530 = vmatprep.subr.mxu0 0.0
        %531 = vmatpush1.msra.mxu0 %v338
        %532 = vmatprep.subr.mxu0 0.0
        %533 = vmatpush1.msra.mxu0 0.0
        %534 = vmatprep.subr.mxu0 0.0
        %535 = vmatpush1.msra.mxu0 0.0
        %536 = vmatprep.subr.mxu0 0.0
        %537 = vmatpush1.msra.mxu0 0.0
        %538 = vmatprep.subr.mxu0 0.0
        %539 = vmatpush1.msra.mxu0 0.0
        %540 = vmatprep.subr.mxu0 0.0
        %541 = vmatpush1.msra.mxu0 0.0
        %542 = vmatprep.subr.mxu0 0.0
        %543 = vmatpush1.msra.mxu0 0.0
        %544 = vmatprep.subr.mxu0 0.0
        %545 = vmatpush1.msra.mxu0 0.0
        %546 = vmatprep.subr.mxu0 0.0
        %547 = vmatpush1.msra.mxu0 0.0
        %548 = vmatprep.subr.mxu0 0.0
        %549 = vmatpush1.msra.mxu0 0.0
        %550 = vmatprep.subr.mxu0 0.0
        %551 = vmatpush1.msra.mxu0 0.0
        %552 = vmatprep.subr.mxu0 0.0
        %553 = vmatpush1.msra.mxu0 0.0
        %554 = vmatprep.subr.mxu0 0.0
        %555 = vmatpush1.msra.mxu0 0.0
        %556 = vmatprep.subr.mxu0 0.0
        %557 = vmatpush1.msra.mxu0 0.0
        %558 = vmatprep.subr.mxu0 0.0
        %559 = vmatpush1.msra.mxu0 0.0
        %560 = vmatprep.subr.mxu0 0.0
        %561 = vmatpush1.msra.mxu0 0.0
        %562 = vmatprep.subr.mxu0 0.0
        %563 = vmatpush1.msra.mxu0 0.0
        %564 = vmatprep.mubr.f32.mxu0 0.0
        %565 = vmatmul.mubr.f32.gmra.mrb[0].mxu0 %v275
        %v566 = vpop.f32.mrb[0].mxu0
        %v567 = vadd.f32 0.0, %v566
        %v568 = vpop.f32.mrb[0].mxu0
        %569 = vmatprep.mubr.f32.mxu0 0.0
        %570 = vmatmul.mubr.f32.gmra.mrb[0].mxu0 %v276
        %v571 = vpop.f32.mrb[0].mxu0
        %v572 = vadd.f32 0.0, %v571
        %v573 = vpop.f32.mrb[0].mxu0
        %574 = vmatprep.mubr.f32.mxu0 0.0
        %575 = vmatmul.mubr.f32.gmra.mrb[0].mxu0 %v277
        %v576 = vpop.f32.mrb[0].mxu0
        %v577 = vadd.f32 0.0, %v576
        %v578 = vpop.f32.mrb[0].mxu0
        %579 = vmatprep.mubr.f32.mxu0 0.0
        %580 = vmatmul.mubr.f32.gmra.mrb[0].mxu0 %v278
        %v581 = vpop.f32.mrb[0].mxu0
        %v582 = vadd.f32 0.0, %v581
        %v583 = vpop.f32.mrb[0].mxu0
        %584 = vmatprep.mubr.f32.mxu0 0.0
        %585 = vmatmul.mubr.f32.gmra.mrb[0].mxu0 %v279
        %v586 = vpop.f32.mrb[0].mxu0
        %v587 = vadd.f32 0.0, %v586
        %v588 = vpop.f32.mrb[0].mxu0
        %589 = vmatprep.mubr.f32.mxu0 0.0
        %590 = vmatmul.mubr.f32.gmra.mrb[0].mxu0 %v280
        %v591 = vpop.f32.mrb[0].mxu0
        %v592 = vadd.f32 0.0, %v591
        %v593 = vpop.f32.mrb[0].mxu0
        %594 = vmatprep.mubr.f32.mxu0 0.0
        %595 = vmatmul.mubr.f32.gmra.mrb[0].mxu0 %v281
        %v596 = vpop.f32.mrb[0].mxu0
        %v597 = vadd.f32 0.0, %v596
        %v598 = vpop.f32.mrb[0].mxu0
        %599 = vmatprep.mubr.f32.mxu0 0.0
        %600 = vmatmul.mubr.f32.gmra.mrb[0].mxu0 %v282
        %v601 = vpop.f32.mrb[0].mxu0
        %v602 = vadd.f32 0.0, %v601
        %v603 = vpop.f32.mrb[0].mxu0
        %604 = vmatprep.mubr.f32.mxu0 0.0
        %605 = vmatmul.mubr.f32.gmra.mrb[0].mxu0 %v283
        %v606 = vpop.f32.mrb[0].mxu0
        %v607 = vadd.f32 0.0, %v606
        %v608 = vpop.f32.mrb[0].mxu0
        %609 = vmatprep.mubr.f32.mxu0 0.0
        %610 = vmatmul.mubr.f32.gmra.mrb[0].mxu0 %v284
        %v611 = vpop.f32.mrb[0].mxu0
        %v612 = vadd.f32 0.0, %v611
        %v613 = vpop.f32.mrb[0].mxu0
        %614 = vmatprep.mubr.f32.mxu0 0.0
        %615 = vmatmul.mubr.f32.gmra.mrb[0].mxu0 %v285
        %v616 = vpop.f32.mrb[0].mxu0
        %v617 = vadd.f32 0.0, %v616
        %v618 = vpop.f32.mrb[0].mxu0
        %619 = vmatprep.mubr.f32.mxu0 0.0
        %620 = vmatmul.mubr.f32.gmra.mrb[0].mxu0 %v286
        %v621 = vpop.f32.mrb[0].mxu0
        %v622 = vadd.f32 0.0, %v621
        %v623 = vpop.f32.mrb[0].mxu0
        %624 = vmatprep.mubr.f32.mxu0 0.0
        %625 = vmatmul.mubr.f32.gmra.mrb[0].mxu0 %v287
        %v626 = vpop.f32.mrb[0].mxu0
        %v627 = vadd.f32 0.0, %v626
        %v628 = vpop.f32.mrb[0].mxu0
        %629 = vmatprep.mubr.f32.mxu0 0.0
        %630 = vmatmul.mubr.f32.gmra.mrb[0].mxu0 %v288
        %v631 = vpop.f32.mrb[0].mxu0
        %v632 = vadd.f32 0.0, %v631
        %v633 = vpop.f32.mrb[0].mxu0
        %634 = vmatprep.mubr.f32.mxu0 0.0
        %635 = vmatmul.mubr.f32.gmra.mrb[0].mxu0 %v289
        %v636 = vpop.f32.mrb[0].mxu0
        %v637 = vadd.f32 0.0, %v636
        %v638 = vpop.f32.mrb[0].mxu0
        %639 = vmatprep.mubr.f32.mxu0 0.0
        %640 = vmatmul.mubr.f32.gmra.mrb[0].mxu0 %v290
        %v641 = vpop.f32.mrb[0].mxu0
        %v642 = vadd.f32 0.0, %v641
        %v643 = vpop.f32.mrb[0].mxu0
        %644 = vdwg.mxu0
        %v645 = vmul.f32 %v406, 0.70710677
        %v646 = vmul.f32 %v412, 0.70710677
        %v647 = vmul.f32 %v418, 0.70710677
        %v648 = vmul.f32 %v424, 0.70710677
        %v649 = vmul.f32 %v430, 0.70710677
        %v650 = vmul.f32 %v436, 0.70710677
        %v651 = vmul.f32 %v442, 0.70710677
        %v652 = vmul.f32 %v448, 0.70710677
        %v653 = vmul.f32 %v454, 0.70710677
        %v654 = vmul.f32 %v460, 0.70710677
        %v655 = vmul.f32 %v466, 0.70710677
        %v656 = vmul.f32 %v472, 0.70710677
        %v657 = vmul.f32 %v478, 0.70710677
        %v658 = vmul.f32 %v484, 0.70710677
        %v659 = vmul.f32 %v490, 0.70710677
        %v660 = vmul.f32 %v496, 0.70710677
        %661 = vst [vmem:[%s256] sm:$0xff] %v645
        %662 = vst [vmem:[%s256 + $0x8] sm:$0xff] %v646
        %663 = vst [vmem:[%s256 + $0x10] sm:$0xff] %v647
        %664 = vst [vmem:[%s256 + $0x18] sm:$0xff] %v648
        %665 = vst [vmem:[%s256 + $0x20] sm:$0xff] %v649
        %666 = vst [vmem:[%s256 + $0x28] sm:$0xff] %v650
        %667 = vst [vmem:[%s256 + $0x30] sm:$0xff] %v651
        %668 = vst [vmem:[%s256 + $0x38] sm:$0xff] %v652
        %669 = vst [vmem:[%s256 + $0x40] sm:$0xff] %v653
        %670 = vst [vmem:[%s256 + $0x48] sm:$0xff] %v654
        %671 = vst [vmem:[%s256 + $0x50] sm:$0xff] %v655
        %672 = vst [vmem:[%s256 + $0x58] sm:$0xff] %v656
        %673 = vst [vmem:[%s256 + $0x60] sm:$0xff] %v657
        %674 = vst [vmem:[%s256 + $0x68] sm:$0xff] %v658
        %675 = vst [vmem:[%s256 + $0x70] sm:$0xff] %v659
        %676 = vst [vmem:[%s256 + $0x78] sm:$0xff] %v660
        %677 = vst [vmem:[%s263] sm:$0xff] %v408
        %678 = vst [vmem:[%s263 + $0x8] sm:$0xff] %v414
        %679 = vst [vmem:[%s263 + $0x10] sm:$0xff] %v420
        %680 = vst [vmem:[%s263 + $0x18] sm:$0xff] %v426
        %681 = vst [vmem:[%s263 + $0x20] sm:$0xff] %v432
        %682 = vst [vmem:[%s263 + $0x28] sm:$0xff] %v438
        %683 = vst [vmem:[%s263 + $0x30] sm:$0xff] %v444
        %684 = vst [vmem:[%s263 + $0x38] sm:$0xff] %v450
        %685 = vst [vmem:[%s263 + $0x40] sm:$0xff] %v456
        %686 = vst [vmem:[%s263 + $0x48] sm:$0xff] %v462
        %687 = vst [vmem:[%s263 + $0x50] sm:$0xff] %v468
        %688 = vst [vmem:[%s263 + $0x58] sm:$0xff] %v474
        %689 = vst [vmem:[%s263 + $0x60] sm:$0xff] %v480
        %690 = vst [vmem:[%s263 + $0x68] sm:$0xff] %v486
        %691 = vst [vmem:[%s263 + $0x70] sm:$0xff] %v492
        %692 = vst [vmem:[%s263 + $0x78] sm:$0xff] %v498
        %693 = vst [vmem:[%s270] sm:$0xff] %v567
        %694 = vst [vmem:[%s270 + $0x8] sm:$0xff] %v572
        %695 = vst [vmem:[%s270 + $0x10] sm:$0xff] %v577
        %696 = vst [vmem:[%s270 + $0x18] sm:$0xff] %v582
        %697 = vst [vmem:[%s270 + $0x20] sm:$0xff] %v587
        %698 = vst [vmem:[%s270 + $0x28] sm:$0xff] %v592
        %699 = vst [vmem:[%s270 + $0x30] sm:$0xff] %v597
        %700 = vst [vmem:[%s270 + $0x38] sm:$0xff] %v602
        %701 = vst [vmem:[%s270 + $0x40] sm:$0xff] %v607
        %702 = vst [vmem:[%s270 + $0x48] sm:$0xff] %v612
        %703 = vst [vmem:[%s270 + $0x50] sm:$0xff] %v617
        %704 = vst [vmem:[%s270 + $0x58] sm:$0xff] %v622
        %705 = vst [vmem:[%s270 + $0x60] sm:$0xff] %v627
        %706 = vst [vmem:[%s270 + $0x68] sm:$0xff] %v632
        %707 = vst [vmem:[%s270 + $0x70] sm:$0xff] %v637
        %708 = vst [vmem:[%s270 + $0x78] sm:$0xff] %v642
        %s709 = sand.u32 %s97, 1
        %s710 = scalar_lea.sflag [#allocation4], %s709
        %s711 = sand.u32 %s97, 1
        %s712 = smul.addr %s711, 128
        %s713 = scalar_lea.vmem [#allocation7], %s712
        %s714 = sand.u32 %s26, 1
        %s715 = scalar_lea.sflag [#allocation9], %s714
        %s716 = sand.u32 %s125, 1
        %s717 = smul.addr %s716, 128
        %s718 = scalar_lea.vmem [#allocation8], %s717
        %s719 = sand.u32 %s26, 1
        %s720 = scalar_lea.sflag [#allocation9], %s719
        %s721 = sand.u32 %s153, 1
        %s722 = smul.addr %s721, 128
        %s723 = scalar_lea.vmem [#allocation10], %s722
        // Predicated region
        $region37: #{tpu_custom_call.1} parent=27 // pred_check
          %p724 = pneg %p107
        $region38: #{tpu_custom_call.1} parent=27 // pred_check_branch
          %726 = sbr.rel (%p724) target = $region40
        $region39: #{tpu_custom_call.1} parent=27 // pred_region
          %s727 = smul.u32 16, %s31
          %s729 = ssub.s32 2048, 2048
          %730 = vsyncadd %s710, %s729
          %s731 = smul.addr %s30, 16
          %s732 = sadd.s32 %s727, %s731
          %s733 = smul.addr %s732, 128
          %s734 = scalar_lea.hbm %s2, %s733
          %s735 = sshll.u32 %s713, 4
          %s736 = int_to_ptr.vmem [resolvable:$true] %s735
          %741 = dma.vmem_to_hbm [thread:$0]  %s736, 2048, %s734, %s710, 128, 128, 8
        $region40: #{tpu_custom_call.1} parent=27 // pred_fallthru
          _
        // Predicated region
        $region41: #{tpu_custom_call.1} parent=27 // pred_check
          %p742 = pneg %p135
        $region42: #{tpu_custom_call.1} parent=27 // pred_check_branch
          %744 = sbr.rel (%p742) target = $region44
        $region43: #{tpu_custom_call.1} parent=27 // pred_region
          %s745 = smul.u32 16, %s31
          %s747 = ssub.s32 2048, 2048
          %748 = vsyncadd %s715, %s747
          %s749 = smul.addr %s30, 16
          %s750 = sadd.s32 %s745, %s749
          %s751 = smul.addr %s750, 128
          %s752 = scalar_lea.hbm %s3, %s751
          %s753 = sshll.u32 %s718, 4
          %s754 = int_to_ptr.vmem [resolvable:$true] %s753
          %759 = dma.vmem_to_hbm [thread:$0]  %s754, 2048, %s752, %s715, 128, 128, 8
        $region44: #{tpu_custom_call.1} parent=27 // pred_fallthru
          _
        // Predicated region
        $region45: #{tpu_custom_call.1} parent=27 // pred_check
          %p760 = pneg %p163
        $region46: #{tpu_custom_call.1} parent=27 // pred_check_branch
          %762 = sbr.rel (%p760) target = $region48
        $region47: #{tpu_custom_call.1} parent=27 // pred_region
          %s763 = smul.u32 16, %s31
          %s765 = ssub.s32 2048, 2048
          %766 = vsyncadd %s720, %s765
          %s767 = smul.addr %s30, 16
          %s768 = sadd.s32 %s763, %s767
          %s769 = smul.addr %s768, 128
          %s770 = scalar_lea.hbm %s4, %s769
          %s771 = sshll.u32 %s723, 4
          %s772 = int_to_ptr.vmem [resolvable:$true] %s771
          %777 = dma.vmem_to_hbm [thread:$0]  %s772, 2048, %s770, %s720, 128, 128, 8
        $region48: #{tpu_custom_call.1} parent=27 // pred_fallthru
          _
      $region28: #{tpu_custom_call.1} parent=5 // pred_fallthru
        _
      %p778 = scmp.le.s32.totalorder 2, %s21
      // Predicated region
      $region49: #{tpu_custom_call.1} parent=5 // pred_check
        %p779 = pneg %p778
      $region50: #{tpu_custom_call.1} parent=5 // pred_check_branch
        %781 = sbr.rel (%p779) target = $region52
      $region51: #{tpu_custom_call.1} parent=5 // pred_region
        %s782 = ssub.s32 %s21, 2
        // Predicated region
        $region53: #{tpu_custom_call.1} parent=51 // pred_check
          %p783 = pneg %p113
        $region54: #{tpu_custom_call.1} parent=51 // pred_check_branch
          %785 = sbr.rel (%p783) target = $region56
        $region55: #{tpu_custom_call.1} parent=51 // pred_region
          %s786 = sand.u32 %s98, 1
          %s787 = scalar_lea.sflag [#allocation4], %s786
          %s788 = sand.u32 %s98, 1
          %s789 = smul.addr %s788, 128
          %s790 = scalar_lea.vmem [#allocation7], %s789
          %791 = dma.done %s787, 2048
        $region56: #{tpu_custom_call.1} parent=51 // pred_fallthru
          _
        // Predicated region
        $region57: #{tpu_custom_call.1} parent=51 // pred_check
          %p792 = pneg %p141
        $region58: #{tpu_custom_call.1} parent=51 // pred_check_branch
          %794 = sbr.rel (%p792) target = $region60
        $region59: #{tpu_custom_call.1} parent=51 // pred_region
          %s795 = sand.u32 %s27, 1
          %s796 = scalar_lea.sflag [#allocation9], %s795
          %s797 = sand.u32 %s126, 1
          %s798 = smul.addr %s797, 128
          %s799 = scalar_lea.vmem [#allocation8], %s798
          %800 = dma.done %s796, 2048
        $region60: #{tpu_custom_call.1} parent=51 // pred_fallthru
          _
        // Predicated region
        $region61: #{tpu_custom_call.1} parent=51 // pred_check
          %p801 = pneg %p169
        $region62: #{tpu_custom_call.1} parent=51 // pred_check_branch
          %803 = sbr.rel (%p801) target = $region64
        $region63: #{tpu_custom_call.1} parent=51 // pred_region
          %s804 = sand.u32 %s27, 1
          %s805 = scalar_lea.sflag [#allocation9], %s804
          %s806 = sand.u32 %s154, 1
          %s807 = smul.addr %s806, 128
          %s808 = scalar_lea.vmem [#allocation10], %s807
          %809 = dma.done %s805, 2048
        $region64: #{tpu_custom_call.1} parent=51 // pred_fallthru
          _
      $region52: #{tpu_custom_call.1} parent=5 // pred_fallthru
        _
    $region6: #{tpu_custom_call.1} parent=1 // loop_footer
      %s25 = sadd.s32 1, %s21
    $region7: #{tpu_custom_call.1} parent=1 // loop_footer_branch
      %20 = sbr.rel target = $region3
    $region8: #{tpu_custom_call.1} parent=1 // loop_exit
      _
    %810 = vsyncpa [#allocation3], 1
    %s811 = scalar_lea.sflag [#allocation3], 1
    %812 = vsyncpa %s811, 1
    %813 = vsyncpa [#allocation6], 1
    %814 = vsyncpa [#allocation4], 1
    %s815 = scalar_lea.sflag [#allocation4], 1
    %816 = vsyncpa %s815, 1
    %817 = vsyncpa [#allocation9], 1
    %s818 = scalar_lea.sflag [#allocation9], 1
    %819 = vsyncpa %s818, 1

</llo_original>
